<compile_context>
chip_gen: v7x
topology: tpu7x:2x2x1
jax: 0.10.0
libtpu: 0.0.40
codegen_flags: <defaults>
</compile_context>

<pallas_src>
import math
import jax
import jax.numpy as jnp
from jax.experimental import pallas as pl
from jax.experimental.pallas import tpu as pltpu


def _round_up(x, m):
    return ((x + m - 1) // m) * m


# ----------------------------------------------------------------------------
# Pallas kernel: one (tm, td) tile of  out = weight * input
# ----------------------------------------------------------------------------
def cmul_kernel(x_ref, w_ref, o_ref):
    # x_ref: (tm, td), w_ref: (1, td) -> broadcast over sublanes (rows).
    o_ref[...] = x_ref[...] * w_ref[...]


def cmul(x, weight, *, tm_max=512, td_max=2048, target_block_bytes=4 << 20):
    """x: (N, D) float32; weight: (D,) float32 -> (N, D) float32."""
    N, D = x.shape
    assert weight.shape == (D,)
    dt_bytes = jnp.dtype(x.dtype).itemsize

    # Feature (lane) tile: prefer covering the full (128-rounded) feature width
    # so the weight lives in VMEM once; cap at td_max.
    td = min(td_max, max(128, _round_up(D, 128)))
    # Row (sublane) tile: as large as the block-byte budget allows, multiple of 8.
    tm_budget = max(8, (target_block_bytes // (td * dt_bytes)) // 8 * 8)
    tm = min(tm_max, max(8, _round_up(N, 8)), tm_budget)

    # Weight as a (1, D) row so it broadcasts over sublanes inside the kernel.
    w2 = weight.reshape(1, D)

    # Feature axis OUTER, row axis INNER: the weight block index (0, j) is then
    # constant across consecutive inner steps, so Pallas skips its re-DMA.
    grid = (pl.cdiv(D, td), pl.cdiv(N, tm))

    # Scoped VMEM: double-buffered input + output blocks (+ weight) with slack.
    block_bytes = tm * td * dt_bytes
    vmem_limit = 4 * block_bytes + 2 * td * dt_bytes + (4 << 20)
    vmem_limit = max(16 << 20, min(48 << 20, vmem_limit))

    cost = pl.CostEstimate(
        flops=N * D,
        transcendentals=0,
        bytes_accessed=2 * N * D * dt_bytes + D * dt_bytes,
    )

    return pl.pallas_call(
        cmul_kernel,
        out_shape=jax.ShapeDtypeStruct((N, D), x.dtype),
        grid_spec=pltpu.PrefetchScalarGridSpec(
            num_scalar_prefetch=0,
            grid=grid,
            in_specs=[
                pl.BlockSpec((tm, td), lambda j, i: (i, j)),  # input tile
                pl.BlockSpec((1, td), lambda j, i: (0, j)),   # weight row (resident)
            ],
            out_specs=pl.BlockSpec((tm, td), lambda j, i: (i, j)),
        ),
        compiler_params=pltpu.CompilerParams(
            dimension_semantics=("parallel", "parallel"),
            vmem_limit_bytes=vmem_limit,
        ),
        cost_estimate=cost,
    )(x, w2)


# ----------------------------------------------------------------------------
# Module-equivalent parameter init (reset_parameters) + reference forward.
# ----------------------------------------------------------------------------
def init_cmul(key, in_dim):
    stdv = 1.0 / math.sqrt(in_dim)
    return jax.random.uniform(key, (in_dim,), jnp.float32, -stdv, stdv)


def cmul_ref(x, weight):
    # torch.mul(weight.repeat(N, 1), input)
    return weight[None, :] * x


if __name__ == "__main__":
    N, in_dim = 8, 32

    key = jax.random.PRNGKey(0)
    key, k_w, k_x = jax.random.split(key, 3)

    weight = init_cmul(k_w, in_dim)
    x = jax.random.normal(k_x, (N, in_dim), jnp.float32)

    out = cmul(x, weight)
    out = jax.block_until_ready(out)

    ref = cmul_ref(x, weight)
    assert out.shape == (N, in_dim)
    assert jnp.allclose(out, ref, atol=1e-6, rtol=1e-6)

    print("KERNEL_OK")
</pallas_src>

<mosaic_0001>
module attributes {stable_mosaic.version = 11 : i64} {
  func.func @cmul_kernel(%arg0: i32, %arg1: i32, %arg2: memref<8x128xf32, #tpu.memory_space<vmem>>, %arg3: memref<1x128xf32, #tpu.memory_space<vmem>>, %arg4: memref<8x128xf32, #tpu.memory_space<vmem>>) attributes {dimension_semantics = [#tpu.dimension_semantics<parallel>, #tpu.dimension_semantics<parallel>], iteration_bounds = array<i64: 1, 1>, scalar_prefetch = 0 : i64, scratch_operands = 0 : i64, tpu.core_type = #tpu.core_type<tc>, window_params = [{transform_indices = @transform_0, window_bounds = array<i64: 8, 128>}, {transform_indices = @transform_1, window_bounds = array<i64: 1, 128>}, {transform_indices = @transform_2, window_bounds = array<i64: 8, 128>}]} {
    %c0 = arith.constant 0 : index
    %c0_0 = arith.constant 0 : index
    %0 = vector.load %arg2[%c0, %c0_0] : memref<8x128xf32, #tpu.memory_space<vmem>>, vector<8x128xf32>
    %c0_1 = arith.constant 0 : index
    %c0_2 = arith.constant 0 : index
    %1 = vector.load %arg3[%c0_1, %c0_2] : memref<1x128xf32, #tpu.memory_space<vmem>>, vector<1x128xf32>
    %2 = vector.broadcast %1 : vector<1x128xf32> to vector<8x128xf32>
    %3 = arith.mulf %0, %2 : vector<8x128xf32>
    %c0_3 = arith.constant 0 : index
    %c0_4 = arith.constant 0 : index
    %4 = vector.load %arg4[%c0_3, %c0_4] : memref<8x128xf32, #tpu.memory_space<vmem>>, vector<8x128xf32>
    tpu.vector_store %arg4[%c0_3, %c0_4], %3 {strides = array<i32>} : memref<8x128xf32, #tpu.memory_space<vmem>>, vector<8x128xf32>,
    return
  }
  func.func @transform_0(%arg0: i32, %arg1: i32) -> (i32, i32) {
    %c0_i32 = arith.constant 0 : i32
    return %arg1, %arg0 : i32, i32
  }
  func.func @transform_1(%arg0: i32, %arg1: i32) -> (i32, i32) {
    %c0_i32 = arith.constant 0 : i32
    %c0_i32_0 = arith.constant 0 : i32
    return %c0_i32, %arg0 : i32, i32
  }
  func.func @transform_2(%arg0: i32, %arg1: i32) -> (i32, i32) {
    %c0_i32 = arith.constant 0 : i32
    return %arg1, %arg0 : i32, i32
  }
}

</mosaic_0001>

<llo_original>
// kernel: tpu_custom_call.1
$region0: #{tpu_custom_call.1}
  #allocation0 [shape = 'u32[]', space=smem, size = 0x4, offset = 0x4, fixed_abs, tag = 'smem constant byte address 0x4 - core index']
  #allocation1 [shape = 'u32[144,128]{1,0:T(1,128)}', space=vmem, size = 0x12000, scoped, tag = 'internal scratch']
  %s0 = inlined_call_operand.hbm [shape: f32[8,32], index: 0, kind: input, shape index: {}]
  %s1 = inlined_call_operand.vmem [shape: f32[1,32], index: 1, kind: input, shape index: {}]
  %s2 = inlined_call_operand.hbm [shape: f32[8,32], index: 2, kind: output, shape index: {}]
  %s3 = sld [smem:[#allocation0]]
  $region22: #{tpu_custom_call.1} parent=0
    _
  %s5 = ssub.s32 1, %s3
  %s6 = scalar_select 0, %s5, %s3
  $region1: #{tpu_custom_call.1} parent=0
    #allocation2 [shape = 'u8[4096]{0}', space=vmem, size = 0x1000, scoped, tag = 'input window, operand 0, single buffered']
    #allocation3 [shape = 's32[1]{0}', space=sflag, size = 0x4, scoped, tag = 'scoped memory for tpu_custom_call.1']
    #allocation4 [shape = 's32[1]{0}', space=sflag, size = 0x4, scoped, tag = 'scoped memory for tpu_custom_call.1']
    #allocation5 [shape = 'u8[4096]{0}', space=vmem, size = 0x1000, scoped, tag = 'output window, operand 0, single buffered']
    %7 = vsyncpa [#allocation3], 0
    %8 = vsyncpa [#allocation4], 0
    // Predicated region
    $region2: #{tpu_custom_call.1} parent=1 // pred_check
      _
    $region3: #{tpu_custom_call.1} parent=1 // pred_check_branch
      %10 = sbr.rel (0) target = $region5
    $region4: #{tpu_custom_call.1} parent=1 // pred_region
      %s12 = ssub.s32 128, 128
      %13 = vsyncadd [#allocation3], %s12
      %s15 = sshll.u32 [#allocation2], 4
      %s16 = int_to_ptr.vmem [resolvable:$true] %s15
      %18 = dma.hbm_to_vmem [thread:$0]  %s0, 128, %s16, [#allocation3]
    $region5: #{tpu_custom_call.1} parent=1 // pred_fallthru
      _
    // Predicated region
    $region6: #{tpu_custom_call.1} parent=1 // pred_check
      _
    $region7: #{tpu_custom_call.1} parent=1 // pred_check_branch
      %20 = sbr.rel (0) target = $region9
    $region8: #{tpu_custom_call.1} parent=1 // pred_region
      _
    $region9: #{tpu_custom_call.1} parent=1 // pred_fallthru
      _
    // Predicated region
    $region10: #{tpu_custom_call.1} parent=1 // pred_check
      _
    $region11: #{tpu_custom_call.1} parent=1 // pred_check_branch
      %22 = sbr.rel (0) target = $region13
    $region12: #{tpu_custom_call.1} parent=1 // pred_region
      %23 = dma.done [#allocation3], 128
    $region13: #{tpu_custom_call.1} parent=1 // pred_fallthru
      _
    %v24 = vld [vmem:[#allocation2] sm:$0xff]
    %v25 = vld [vmem:[%s1] sm:$0x1]
    %v27 = vlaneseq
    %v28 = vshrl.u32 %v27, 7
    %v29 = vsub.s32 0, %v28
    %v30 = vrot.slane %v25, %v29
    %v32 = vmul.f32 %v24, %v30
    %33 = vst [vmem:[#allocation5] sm:$0xff] %v32
    // Predicated region
    $region14: #{tpu_custom_call.1} parent=1 // pred_check
      _
    $region15: #{tpu_custom_call.1} parent=1 // pred_check_branch
      %35 = sbr.rel (0) target = $region17
    $region16: #{tpu_custom_call.1} parent=1 // pred_region
      %s37 = ssub.s32 128, 128
      %38 = vsyncadd [#allocation4], %s37
      %s40 = sshll.u32 [#allocation5], 4
      %s41 = int_to_ptr.vmem [resolvable:$true] %s40
      %43 = dma.vmem_to_hbm [thread:$0]  %s41, 128, %s2, [#allocation4]
    $region17: #{tpu_custom_call.1} parent=1 // pred_fallthru
      _
    // Predicated region
    $region18: #{tpu_custom_call.1} parent=1 // pred_check
      _
    $region19: #{tpu_custom_call.1} parent=1 // pred_check_branch
      %45 = sbr.rel (0) target = $region21
    $region20: #{tpu_custom_call.1} parent=1 // pred_region
      %46 = dma.done [#allocation4], 128
    $region21: #{tpu_custom_call.1} parent=1 // pred_fallthru
      _
    %47 = vsyncpa [#allocation3], 1
    %48 = vsyncpa [#allocation4], 1

</llo_original>
